<compile_context>
chip_gen: v7x
topology: tpu7x:2x2x1
jax: 0.10.0
libtpu: 0.0.40
codegen_flags: <defaults>
</compile_context>

<pallas_src>
import functools

import jax
import jax.numpy as jnp
import numpy as np
from jax.experimental import pallas as pl
from jax.experimental.pallas import tpu as pltpu


def _round_up(v, m):
    return (v + m - 1) // m * m


def _device_kind():
    try:
        return jax.devices()[0].device_kind.lower()
    except Exception:
        return ""


_ROLL_SIGN = None


def _roll_sign():
    """+1 if pltpu.roll(x, s) == jnp.roll(x, s) (positive shift -> higher idx)."""
    global _ROLL_SIGN
    if _ROLL_SIGN is None:
        def probe(x_ref, o_ref):
            o_ref[...] = pltpu.roll(x_ref[...], shift=1, axis=1)
        try:
            x = jnp.broadcast_to(jnp.arange(128, dtype=jnp.float32), (8, 128))
            r = pl.pallas_call(
                probe, out_shape=jax.ShapeDtypeStruct((8, 128), jnp.float32))(x)
            _ROLL_SIGN = 1 if float(r[0, 1]) == 0.0 else -1
        except Exception:
            _ROLL_SIGN = 1
    return _ROLL_SIGN


def _window_mlp_kernel(W, B, NT, Fp, HALO_PAD, CARRY_W, carry_in_kernel,
                       compute_dtype, act_dtype, roll_sign,
                       slab_ref, halo_ref, w1_ref, b1_ref, w2_ref, b2_ref,
                       w3_ref, b3_ref, w4_ref, b4_ref,
                       out_ref, im2col_ref, carry_ref):
    """One grid step == one tile of NT = Tc*B output columns (column n = t*B + b)."""
    f32 = jnp.float32
    j = pl.program_id(0)

    # ---- stage the (W*Fp, NT) im2col slab: aligned single-matmul layer-1 RHS ----
    # cat column HALO_PAD + n holds frame n//B of this tile; the halo supplies
    # the W frames preceding the tile (frame 0 replicated before t=0).
    cat = jnp.concatenate([halo_ref[0], slab_ref[...]], axis=1)   # (Fp, HALO_PAD+NT)
    for w in range(W):                                            # static unroll
        start = HALO_PAD - (W - w) * B
        im2col_ref[w * Fp:(w + 1) * Fp, :] = cat[:, start:start + NT]

    # ---- 4-layer tanh MLP; MXU matmuls with f32 accumulation ----
    h = jnp.tanh((jnp.dot(w1_ref[...], im2col_ref[...],
                          preferred_element_type=f32) + b1_ref[...]).astype(act_dtype))
    h = jnp.tanh((jnp.dot(w2_ref[...], h.astype(compute_dtype),
                          preferred_element_type=f32) + b2_ref[...]).astype(act_dtype))
    h = jnp.tanh((jnp.dot(w3_ref[...], h.astype(compute_dtype),
                          preferred_element_type=f32) + b3_ref[...]).astype(act_dtype))
    # layer-4 tanh stays f32: it feeds the exact !=0 compare and the output.
    out = jnp.tanh(jnp.dot(w4_ref[...], h.astype(compute_dtype),
                           preferred_element_type=f32) + b4_ref[...])   # (Op, NT) f32

    if not carry_in_kernel:
        out_ref[...] = out
        return

    # ---- hold-last-nonzero: in-tile log-depth scan (roll + lane mask) ----
    Op = out.shape[0]

    @pl.when(j == 0)
    def _init():
        carry_ref[...] = jnp.zeros_like(carry_ref)

    # carry_ref convention: lanes [0, B) hold the per-batch carry, rest zeros.
    # Merging it into the FIRST time step is enough — the scan propagates it
    # (combine(a, b) = where(b != 0, b, a) is associative with identity 0).
    head = out[:, :CARRY_W]
    head = jnp.where(head != 0.0, head, carry_ref[...])
    if NT > CARRY_W:
        y = jnp.concatenate([head, out[:, CARRY_W:]], axis=1)
    else:
        y = head

    lane = jax.lax.broadcasted_iota(jnp.int32, (Op, NT), 1)
    n_steps = NT // B                        # time steps per tile
    s = 1
    while s < n_steps:                       # static unroll, log2(n_steps) iters
        sb = s * B
        shift = sb if roll_sign > 0 else NT - sb
        shifted = pltpu.roll(y, shift=shift, axis=1)       # XLU lane rotate
        shifted = jnp.where(lane >= sb, shifted, 0.0)      # zero the wrap-around
        y = jnp.where(y != 0.0, y, shifted)
        s *= 2

    # new carry = last time step of this tile, placed in lanes [0, B)
    last = y[:, NT - B:]
    if CARRY_W > B:
        last = jnp.concatenate(
            [last, jnp.zeros((Op, CARRY_W - B), f32)], axis=1)
    carry_ref[...] = last
    out_ref[...] = y


def window_mlp_forward(x, params, window_size, *,
                       compute_dtype=jnp.bfloat16,
                       carry_in_kernel=None,
                       nt_max=4096,
                       vmem_budget_bytes=8 * 1024 * 1024):
    """x: (B, T, F) float32  ->  (B, T, output_size) float32."""
    B, T, F = x.shape
    W = window_size
    w1, b1, w2, b2, w3, b3, w4, b4 = params
    H1, H2, H3, O = w1.shape[0], w2.shape[0], w3.shape[0], w4.shape[0]

    kind = _device_kind()
    if carry_in_kernel is None:
        # v7x has 2 TensorCores: prefer the fully-parallel grid + wrapper scan.
        carry_in_kernel = not ("v7" in kind or "7x" in kind)
    # bf16 tanh only where the VPU/EUP support it (v6e / v7x); f32 elsewhere.
    bf16 = jnp.dtype(compute_dtype) == jnp.dtype(jnp.bfloat16)
    act_dtype = (compute_dtype
                 if (bf16 and any(t in kind for t in ("v6", "v7", "7x")))
                 else jnp.float32)

    cb = jnp.dtype(compute_dtype).itemsize
    sub = 8 * 4 // cb                        # 8 rows for f32, 16 for bf16 packing
    Fp = _round_up(F, sub)
    H1p, H2p, H3p = (_round_up(h, sub) for h in (H1, H2, H3))
    Op = _round_up(O, 8)                     # output stays f32

    # batch padded to a divisor (or multiple) of 128: shifts stay vreg-friendly
    Bp = (1 << (B - 1).bit_length()) if B <= 128 else _round_up(B, 128)
    base = max(128, Bp)                      # lcm(128, Bp)

    HALO = W * Bp
    HALO_PAD = _round_up(HALO, 128)
    CARRY_W = max(128, Bp)

    # ---- tile width: biggest whole-base-block count that fits the VMEM budget ----
    per_col = (2 * Fp * cb + 2 * Op * 4 + W * Fp * cb
               + (H1p + H2p + H3p) * (4 + cb) + 4 * Op * 4)
    needed_blocks = -(-(T * Bp) // base)
    budget_blocks = max(1, vmem_budget_bytes // (per_col * base))
    cap_blocks = max(1, nt_max // base)
    NT = base * max(1, min(needed_blocks, budget_blocks, cap_blocks))
    Ntiles = -(-(T * Bp) // NT)
    Npad = Ntiles * NT

    # ---- lane-dense input slab: column t*Bp + b  <->  x[b, t, :] ----
    xp = x if Bp == B else jnp.pad(x, ((0, Bp - B), (0, 0), (0, 0)))
    xcols = jnp.transpose(xp, (2, 1, 0)).reshape(F, T * Bp)
    xcols = jnp.pad(xcols, ((0, Fp - F), (0, 0)))
    slab = jnp.pad(xcols, ((0, 0), (0, Npad - T * Bp))).astype(compute_dtype)

    # per-tile left halo: the W frames preceding each tile (frame 0 before t=0),
    # right-aligned into a 128-lane block.  Tiny vs. the slab (~HALO/NT overhead).
    left = jnp.pad(xp[:, 0, :].T, ((0, Fp - F), (0, 0)))               # (Fp, Bp)
    full = jnp.concatenate([jnp.tile(left, (1, W)), xcols], axis=1)    # (Fp, HALO+T*Bp)
    col_idx = jnp.arange(Ntiles)[:, None] * NT + jnp.arange(HALO)[None, :]
    halos = jnp.transpose(jnp.take(full, col_idx, axis=1), (1, 0, 2))  # (Ntiles,Fp,HALO)
    halos = jnp.pad(halos, ((0, 0), (0, 0), (HALO_PAD - HALO, 0))).astype(compute_dtype)

    # ---- weights: layer 1 as one (H1p, W*Fp) block matching the im2col rows ----
    w1r = jnp.pad(w1.reshape(H1, W, F), ((0, H1p - H1), (0, 0), (0, Fp - F)))
    w1c = w1r.reshape(H1p, W * Fp).astype(compute_dtype)
    w2p = jnp.pad(w2, ((0, H2p - H2), (0, H1p - H1))).astype(compute_dtype)
    w3p = jnp.pad(w3, ((0, H3p - H3), (0, H2p - H2))).astype(compute_dtype)
    w4p = jnp.pad(w4, ((0, Op - O), (0, H3p - H3))).astype(compute_dtype)
    b1p = jnp.pad(b1, ((0, H1p - H1), (0, 0))).astype(jnp.float32)
    b2p = jnp.pad(b2, ((0, H2p - H2), (0, 0))).astype(jnp.float32)
    b3p = jnp.pad(b3, ((0, H3p - H3), (0, 0))).astype(jnp.float32)
    b4p = jnp.pad(b4, ((0, Op - O), (0, 0))).astype(jnp.float32)

    def full_spec(a):
        return pl.BlockSpec(a.shape, lambda j: (0,) * a.ndim)

    kernel = functools.partial(
        _window_mlp_kernel, W, Bp, NT, Fp, HALO_PAD, CARRY_W,
        carry_in_kernel, compute_dtype, act_dtype,
        _roll_sign() if carry_in_kernel else 1)

    out_flat = pl.pallas_call(
        kernel,
        out_shape=jax.ShapeDtypeStruct((Op, Npad), jnp.float32),
        grid_spec=pltpu.PrefetchScalarGridSpec(
            num_scalar_prefetch=0,
            grid=(Ntiles,),
            in_specs=[pl.BlockSpec((Fp, NT), lambda j: (0, j)),
                      pl.BlockSpec((1, Fp, HALO_PAD), lambda j: (j, 0, 0)),
                      full_spec(w1c), full_spec(b1p),
                      full_spec(w2p), full_spec(b2p),
                      full_spec(w3p), full_spec(b3p),
                      full_spec(w4p), full_spec(b4p)],
            out_specs=pl.BlockSpec((Op, NT), lambda j: (0, j)),
            scratch_shapes=[pltpu.VMEM((W * Fp, NT), compute_dtype),   # im2col
                            pltpu.VMEM((Op, CARRY_W), jnp.float32)],   # carry
        ),
        compiler_params=pltpu.CompilerParams(
            # in-kernel carry needs a sequential tile axis; the carry-free
            # variant is embarrassingly parallel (shards across v7x's 2 TCs).
            dimension_semantics=("arbitrary",) if carry_in_kernel else ("parallel",),
        ),
    )(slab, halos, w1c, b1p, w2p, b2p, w3p, b3p, w4p, b4p)

    out = out_flat[:O, :T * Bp].reshape(O, T, Bp)
    out = jnp.transpose(out, (2, 1, 0))[:B]                           # (B, T, O)
    if not carry_in_kernel:
        # hold-last-nonzero is associative with identity 0
        out = jax.lax.associative_scan(
            lambda a, b: jnp.where(b != 0.0, b, a), out, axis=1)
    return out


def init_params(key, num_features, window_size, output_size):
    """Deterministic PyTorch-Linear-style init: U(-1/sqrt(fan_in), 1/sqrt(fan_in))."""
    in_size = num_features * window_size
    dims = [in_size, in_size // 8, in_size // 16, in_size // 32, output_size]
    params = []
    for li in range(4):
        fan_in, fan_out = dims[li], dims[li + 1]
        key, kw, kb = jax.random.split(key, 3)
        bound = 1.0 / np.sqrt(fan_in)
        w = jax.random.uniform(kw, (fan_out, fan_in), jnp.float32, -bound, bound)
        b = jax.random.uniform(kb, (fan_out, 1), jnp.float32, -bound, bound)
        params += [w, b]
    return tuple(params)


def window_mlp_ref(x, params, W):
    """Pure-JAX reference mirroring the PyTorch forward (dropout = identity)."""
    B, T, F = x.shape
    w1, b1, w2, b2, w3, b3, w4, b4 = params
    pad = jnp.broadcast_to(x[:, 0:1, :], (B, W, F))
    xpad = jnp.concatenate([pad, x], axis=1)
    last = jnp.zeros((B, w4.shape[0]), jnp.float32)
    outs = []
    for i in range(T):
        xc = xpad[:, i:i + W, :].reshape(B, -1)
        h = jnp.tanh(xc @ w1.T + b1[:, 0])
        h = jnp.tanh(h @ w2.T + b2[:, 0])
        h = jnp.tanh(h @ w3.T + b3[:, 0])
        o = jnp.tanh(h @ w4.T + b4[:, 0])
        cur = jnp.where(o != 0.0, o, last)
        outs.append(cur)
        last = cur
    return jnp.stack(outs, axis=1)


if __name__ == "__main__":
    # Small shapes consistent with the module: batch=2, seq=8, features=16,
    # window=8 -> in_size=128, hidden 16/8/4, output_size=1 (data_mode != BOTH).
    B, T, F, W = 2, 8, 16, 8
    OUTPUT_SIZE = 1

    key = jax.random.PRNGKey(0)
    kx, kp, kx2 = jax.random.split(key, 3)
    x = jax.random.normal(kx, (B, T, F), dtype=jnp.float32)
    params = init_params(kp, F, W, OUTPUT_SIZE)
    ref = window_mlp_ref(x, params, W)

    # 1) f32, carry handled inside the kernel (sequential tile axis).
    out = jax.block_until_ready(
        window_mlp_forward(x, params, W, compute_dtype=jnp.float32))
    np.testing.assert_allclose(np.asarray(out), np.asarray(ref), rtol=2e-2, atol=2e-2)

    # 2) f32, fully parallel grid + wrapper associative_scan carry (v7x friendly).
    out_p = jax.block_until_ready(
        window_mlp_forward(x, params, W, compute_dtype=jnp.float32,
                           carry_in_kernel=False))
    np.testing.assert_allclose(np.asarray(out_p), np.asarray(ref), rtol=2e-2, atol=2e-2)

    # 3) default path: bf16 MXU matmuls, f32 accumulation / layer-4 tanh / ==0 compare.
    out_bf = jax.block_until_ready(window_mlp_forward(x, params, W))
    np.testing.assert_allclose(np.asarray(out_bf), np.asarray(ref), rtol=1e-1, atol=1e-1)

    # 4) multi-tile: cross-tile halo + carry (T=80, forced NT=128 -> 2 tiles).
    T2 = 80
    x2 = jax.random.normal(kx2, (B, T2, F), dtype=jnp.float32)
    ref2 = window_mlp_ref(x2, params, W)
    out2 = jax.block_until_ready(
        window_mlp_forward(x2, params, W, compute_dtype=jnp.float32,
                           carry_in_kernel=True, nt_max=128))
    np.testing.assert_allclose(np.asarray(out2), np.asarray(ref2), rtol=2e-2, atol=2e-2)

    # 5) hold-last-nonzero genuinely exercised: zero biases + one nonzero frame in
    #    batch 0 only -> exact-zero outputs elsewhere must hold the last nonzero
    #    value (including across the tile boundary) and not bleed across batch.
    zparams = tuple(p if i % 2 == 0 else jnp.zeros_like(p)
                    for i, p in enumerate(params))
    x3 = jnp.zeros((B, T2, F), jnp.float32).at[0, 3, :].set(
        jax.random.normal(jax.random.PRNGKey(1), (F,), jnp.float32))
    ref3 = window_mlp_ref(x3, zparams, W)
    out3 = jax.block_until_ready(
        window_mlp_forward(x3, zparams, W, compute_dtype=jnp.float32,
                           carry_in_kernel=True, nt_max=128))
    np.testing.assert_allclose(np.asarray(out3), np.asarray(ref3), rtol=2e-2, atol=2e-2)

    print("KERNEL_OK")
</pallas_src>

<mosaic_0001>
module attributes {stable_mosaic.version = 11 : i64} {
  func.func @probe(%arg0: memref<8x128xf32, #tpu.memory_space<vmem>>, %arg1: memref<8x128xf32, #tpu.memory_space<vmem>>) attributes {dimension_semantics = [], scalar_prefetch = 0 : i64, scratch_operands = 0 : i64, tpu.core_type = #tpu.core_type<tc>} {
    %c0 = arith.constant 0 : index
    %c0_0 = arith.constant 0 : index
    %0 = vector.load %arg0[%c0, %c0_0] : memref<8x128xf32, #tpu.memory_space<vmem>>, vector<8x128xf32>
    %c1_i32 = arith.constant 1 : i32
    %1 = tpu.dynamic_rotate %0 by %c1_i32 dim 1 : vector<8x128xf32>, i32 -> vector<8x128xf32>
    %c0_1 = arith.constant 0 : index
    %c0_2 = arith.constant 0 : index
    %2 = vector.load %arg1[%c0_1, %c0_2] : memref<8x128xf32, #tpu.memory_space<vmem>>, vector<8x128xf32>
    tpu.vector_store %arg1[%c0_1, %c0_2], %1 {strides = array<i32>} : memref<8x128xf32, #tpu.memory_space<vmem>>, vector<8x128xf32>,
    return
  }
}

module attributes {stable_mosaic.version = 11 : i64} {
  func.func @_window_mlp_kernel(%arg0: i32, %arg1: memref<16x128xf32, #tpu.memory_space<vmem>>, %arg2: memref<1x16x128xf32, #tpu.memory_space<vmem>>, %arg3: memref<16x128xf32, #tpu.memory_space<vmem>>, %arg4: memref<16x1xf32, #tpu.memory_space<vmem>>, %arg5: memref<8x16xf32, #tpu.memory_space<vmem>>, %arg6: memref<8x1xf32, #tpu.memory_space<vmem>>, %arg7: memref<8x8xf32, #tpu.memory_space<vmem>>, %arg8: memref<8x1xf32, #tpu.memory_space<vmem>>, %arg9: memref<8x8xf32, #tpu.memory_space<vmem>>, %arg10: memref<8x1xf32, #tpu.memory_space<vmem>>, %arg11: memref<8x128xf32, #tpu.memory_space<vmem>>, %arg12: memref<128x128xf32, #tpu.memory_space<vmem>>, %arg13: memref<8x128xf32, #tpu.memory_space<vmem>>) attributes {dimension_semantics = [#tpu.dimension_semantics<arbitrary>], iteration_bounds = array<i64: 1>, scalar_prefetch = 0 : i64, scratch_operands = 2 : i64, tpu.core_type = #tpu.core_type<tc>, window_params = [{transform_indices = @transform_0, window_bounds = array<i64: 16, 128>}, {transform_indices = @transform_1, window_bounds = array<i64: 1, 16, 128>}, {pipeline_mode = #tpu.pipeline_mode<synchronous>, transform_indices = @transform_2, window_bounds = array<i64: 16, 128>}, {pipeline_mode = #tpu.pipeline_mode<synchronous>, transform_indices = @transform_3, window_bounds = array<i64: 16, 1>}, {pipeline_mode = #tpu.pipeline_mode<synchronous>, transform_indices = @transform_4, window_bounds = array<i64: 8, 16>}, {pipeline_mode = #tpu.pipeline_mode<synchronous>, transform_indices = @transform_5, window_bounds = array<i64: 8, 1>}, {pipeline_mode = #tpu.pipeline_mode<synchronous>, transform_indices = @transform_6, window_bounds = array<i64: 8, 8>}, {pipeline_mode = #tpu.pipeline_mode<synchronous>, transform_indices = @transform_7, window_bounds = array<i64: 8, 1>}, {pipeline_mode = #tpu.pipeline_mode<synchronous>, transform_indices = @transform_8, window_bounds = array<i64: 8, 8>}, {pipeline_mode = #tpu.pipeline_mode<synchronous>, transform_indices = @transform_9, window_bounds = array<i64: 8, 1>}, {transform_indices = @transform_10, window_bounds = array<i64: 8, 128>}]} {
    %c0 = arith.constant 0 : index
    %c0_0 = arith.constant 0 : index
    %c0_1 = arith.constant 0 : index
    %0 = vector.load %arg2[%c0, %c0_0, %c0_1] : memref<1x16x128xf32, #tpu.memory_space<vmem>>, vector<1x16x128xf32>
    %1 = vector.shape_cast %0 : vector<1x16x128xf32> to vector<16x128xf32>
    %c0_2 = arith.constant 0 : index
    %c0_3 = arith.constant 0 : index
    %2 = vector.load %arg1[%c0_2, %c0_3] : memref<16x128xf32, #tpu.memory_space<vmem>>, vector<16x128xf32>
    %3 = tpu.concatenate %1, %2 in 1 : vector<16x128xf32>, vector<16x128xf32> -> vector<16x256xf32>
    %4 = vector.extract_strided_slice %3 {offsets = [0, 112], sizes = [16, 128], strides = [1, 1]} : vector<16x256xf32> to vector<16x128xf32>
    %c0_4 = arith.constant 0 : index
    %c0_5 = arith.constant 0 : index
    %5 = vector.load %arg12[%c0_4, %c0_5] : memref<128x128xf32, #tpu.memory_space<vmem>>, vector<16x128xf32>
    tpu.vector_store %arg12[%c0_4, %c0_5], %4 {strides = array<i32>} : memref<128x128xf32, #tpu.memory_space<vmem>>, vector<16x128xf32>,
    %6 = vector.extract_strided_slice %3 {offsets = [0, 114], sizes = [16, 128], strides = [1, 1]} : vector<16x256xf32> to vector<16x128xf32>
    %c16 = arith.constant 16 : index
    %c0_6 = arith.constant 0 : index
    %7 = vector.load %arg12[%c16, %c0_6] : memref<128x128xf32, #tpu.memory_space<vmem>>, vector<16x128xf32>
    tpu.vector_store %arg12[%c16, %c0_6], %6 {strides = array<i32>} : memref<128x128xf32, #tpu.memory_space<vmem>>, vector<16x128xf32>,
    %8 = vector.extract_strided_slice %3 {offsets = [0, 116], sizes = [16, 128], strides = [1, 1]} : vector<16x256xf32> to vector<16x128xf32>
    %c32 = arith.constant 32 : index
    %c0_7 = arith.constant 0 : index
    %9 = vector.load %arg12[%c32, %c0_7] : memref<128x128xf32, #tpu.memory_space<vmem>>, vector<16x128xf32>
    tpu.vector_store %arg12[%c32, %c0_7], %8 {strides = array<i32>} : memref<128x128xf32, #tpu.memory_space<vmem>>, vector<16x128xf32>,
    %10 = vector.extract_strided_slice %3 {offsets = [0, 118], sizes = [16, 128], strides = [1, 1]} : vector<16x256xf32> to vector<16x128xf32>
    %c48 = arith.constant 48 : index
    %c0_8 = arith.constant 0 : index
    %11 = vector.load %arg12[%c48, %c0_8] : memref<128x128xf32, #tpu.memory_space<vmem>>, vector<16x128xf32>
    tpu.vector_store %arg12[%c48, %c0_8], %10 {strides = array<i32>} : memref<128x128xf32, #tpu.memory_space<vmem>>, vector<16x128xf32>,
    %12 = vector.extract_strided_slice %3 {offsets = [0, 120], sizes = [16, 128], strides = [1, 1]} : vector<16x256xf32> to vector<16x128xf32>
    %c64 = arith.constant 64 : index
    %c0_9 = arith.constant 0 : index
    %13 = vector.load %arg12[%c64, %c0_9] : memref<128x128xf32, #tpu.memory_space<vmem>>, vector<16x128xf32>
    tpu.vector_store %arg12[%c64, %c0_9], %12 {strides = array<i32>} : memref<128x128xf32, #tpu.memory_space<vmem>>, vector<16x128xf32>,
    %14 = vector.extract_strided_slice %3 {offsets = [0, 122], sizes = [16, 128], strides = [1, 1]} : vector<16x256xf32> to vector<16x128xf32>
    %c80 = arith.constant 80 : index
    %c0_10 = arith.constant 0 : index
    %15 = vector.load %arg12[%c80, %c0_10] : memref<128x128xf32, #tpu.memory_space<vmem>>, vector<16x128xf32>
    tpu.vector_store %arg12[%c80, %c0_10], %14 {strides = array<i32>} : memref<128x128xf32, #tpu.memory_space<vmem>>, vector<16x128xf32>,
    %16 = vector.extract_strided_slice %3 {offsets = [0, 124], sizes = [16, 128], strides = [1, 1]} : vector<16x256xf32> to vector<16x128xf32>
    %c96 = arith.constant 96 : index
    %c0_11 = arith.constant 0 : index
    %17 = vector.load %arg12[%c96, %c0_11] : memref<128x128xf32, #tpu.memory_space<vmem>>, vector<16x128xf32>
    tpu.vector_store %arg12[%c96, %c0_11], %16 {strides = array<i32>} : memref<128x128xf32, #tpu.memory_space<vmem>>, vector<16x128xf32>,
    %18 = vector.extract_strided_slice %3 {offsets = [0, 126], sizes = [16, 128], strides = [1, 1]} : vector<16x256xf32> to vector<16x128xf32>
    %c112 = arith.constant 112 : index
    %c0_12 = arith.constant 0 : index
    %19 = vector.load %arg12[%c112, %c0_12] : memref<128x128xf32, #tpu.memory_space<vmem>>, vector<16x128xf32>
    tpu.vector_store %arg12[%c112, %c0_12], %18 {strides = array<i32>} : memref<128x128xf32, #tpu.memory_space<vmem>>, vector<16x128xf32>,
    %c0_13 = arith.constant 0 : index
    %c0_14 = arith.constant 0 : index
    %20 = vector.load %arg3[%c0_13, %c0_14] : memref<16x128xf32, #tpu.memory_space<vmem>>, vector<16x128xf32>
    %c0_15 = arith.constant 0 : index
    %c0_16 = arith.constant 0 : index
    %21 = vector.load %arg12[%c0_15, %c0_16] : memref<128x128xf32, #tpu.memory_space<vmem>>, vector<128x128xf32>
    %cst = arith.constant dense<0.000000e+00> : vector<16x128xf32>
    %22 = tpu.matmul %20, %21, %cst {dimension_numbers = #tpu.dot_dimension_numbers<[1], [0], [0], [1], [0, 0, 1, 1], [], []>} : vector<16x128xf32>, vector<128x128xf32>, vector<16x128xf32> -> vector<16x128xf32>
    %c0_17 = arith.constant 0 : index
    %c0_18 = arith.constant 0 : index
    %23 = vector.load %arg4[%c0_17, %c0_18] : memref<16x1xf32, #tpu.memory_space<vmem>>, vector<16x1xf32>
    %24 = vector.broadcast %23 : vector<16x1xf32> to vector<16x128xf32>
    %25 = arith.addf %22, %24 : vector<16x128xf32>
    %26 = math.tanh %25 : vector<16x128xf32>
    %c0_19 = arith.constant 0 : index
    %c0_20 = arith.constant 0 : index
    %27 = vector.load %arg5[%c0_19, %c0_20] : memref<8x16xf32, #tpu.memory_space<vmem>>, vector<8x16xf32>
    %cst_21 = arith.constant dense<0.000000e+00> : vector<8x128xf32>
    %28 = tpu.matmul %27, %26, %cst_21 {dimension_numbers = #tpu.dot_dimension_numbers<[1], [0], [0], [1], [0, 0, 1, 1], [], []>} : vector<8x16xf32>, vector<16x128xf32>, vector<8x128xf32> -> vector<8x128xf32>
    %c0_22 = arith.constant 0 : index
    %c0_23 = arith.constant 0 : index
    %29 = vector.load %arg6[%c0_22, %c0_23] : memref<8x1xf32, #tpu.memory_space<vmem>>, vector<8x1xf32>
    %30 = vector.broadcast %29 : vector<8x1xf32> to vector<8x128xf32>
    %31 = arith.addf %28, %30 : vector<8x128xf32>
    %32 = math.tanh %31 : vector<8x128xf32>
    %c0_24 = arith.constant 0 : index
    %c0_25 = arith.constant 0 : index
    %33 = vector.load %arg7[%c0_24, %c0_25] : memref<8x8xf32, #tpu.memory_space<vmem>>, vector<8x8xf32>
    %cst_26 = arith.constant dense<0.000000e+00> : vector<8x128xf32>
    %34 = tpu.matmul %33, %32, %cst_26 {dimension_numbers = #tpu.dot_dimension_numbers<[1], [0], [0], [1], [0, 0, 1, 1], [], []>} : vector<8x8xf32>, vector<8x128xf32>, vector<8x128xf32> -> vector<8x128xf32>
    %c0_27 = arith.constant 0 : index
    %c0_28 = arith.constant 0 : index
    %35 = vector.load %arg8[%c0_27, %c0_28] : memref<8x1xf32, #tpu.memory_space<vmem>>, vector<8x1xf32>
    %36 = vector.broadcast %35 : vector<8x1xf32> to vector<8x128xf32>
    %37 = arith.addf %34, %36 : vector<8x128xf32>
    %38 = math.tanh %37 : vector<8x128xf32>
    %c0_29 = arith.constant 0 : index
    %c0_30 = arith.constant 0 : index
    %39 = vector.load %arg9[%c0_29, %c0_30] : memref<8x8xf32, #tpu.memory_space<vmem>>, vector<8x8xf32>
    %cst_31 = arith.constant dense<0.000000e+00> : vector<8x128xf32>
    %40 = tpu.matmul %39, %38, %cst_31 {dimension_numbers = #tpu.dot_dimension_numbers<[1], [0], [0], [1], [0, 0, 1, 1], [], []>} : vector<8x8xf32>, vector<8x128xf32>, vector<8x128xf32> -> vector<8x128xf32>
    %c0_32 = arith.constant 0 : index
    %c0_33 = arith.constant 0 : index
    %41 = vector.load %arg10[%c0_32, %c0_33] : memref<8x1xf32, #tpu.memory_space<vmem>>, vector<8x1xf32>
    %42 = vector.broadcast %41 : vector<8x1xf32> to vector<8x128xf32>
    %43 = arith.addf %40, %42 : vector<8x128xf32>
    %44 = math.tanh %43 : vector<8x128xf32>
    %c0_i32 = arith.constant 0 : i32
    %45 = arith.cmpi eq, %arg0, %c0_i32 : i32
    %46 = arith.extui %45 : i1 to i32
    %c0_i32_34 = arith.constant 0 : i32
    %47 = arith.cmpi ne, %46, %c0_i32_34 : i32
    scf.if %47 {
      %cst_61 = arith.constant 0.000000e+00 : f32
      %106 = vector.broadcast %cst_61 : f32 to vector<8x128xf32>
      %c0_62 = arith.constant 0 : index
      %c0_63 = arith.constant 0 : index
      %107 = vector.load %arg13[%c0_62, %c0_63] : memref<8x128xf32, #tpu.memory_space<vmem>>, vector<8x128xf32>
      tpu.vector_store %arg13[%c0_62, %c0_63], %106 {strides = array<i32>} : memref<8x128xf32, #tpu.memory_space<vmem>>, vector<8x128xf32>,
    } else {
    }
    %cst_35 = arith.constant 0.000000e+00 : f32
    %48 = vector.broadcast %cst_35 : f32 to vector<8x128xf32>
    %49 = arith.cmpf one, %44, %48 : vector<8x128xf32>
    %c0_36 = arith.constant 0 : index
    %c0_37 = arith.constant 0 : index
    %50 = vector.load %arg13[%c0_36, %c0_37] : memref<8x128xf32, #tpu.memory_space<vmem>>, vector<8x128xf32>
    %51 = arith.select %49, %44, %50 : vector<8x128xi1>, vector<8x128xf32>
    %52 = tpu.iota {dimensions = array<i32: 1>} : vector<8x128xi32>
    %c2_i32 = arith.constant 2 : i32
    %53 = tpu.dynamic_rotate %51 by %c2_i32 dim 1 : vector<8x128xf32>, i32 -> vector<8x128xf32>
    %c2_i32_38 = arith.constant 2 : i32
    %54 = vector.broadcast %c2_i32_38 : i32 to vector<8x128xi32>
    %55 = arith.cmpi sge, %52, %54 : vector<8x128xi32>
    %cst_39 = arith.constant 0.000000e+00 : f32
    %56 = vector.broadcast %cst_39 : f32 to vector<8x128xf32>
    %57 = arith.select %55, %53, %56 : vector<8x128xi1>, vector<8x128xf32>
    %cst_40 = arith.constant 0.000000e+00 : f32
    %58 = vector.broadcast %cst_40 : f32 to vector<8x128xf32>
    %59 = arith.cmpf one, %51, %58 : vector<8x128xf32>
    %60 = arith.select %59, %51, %57 : vector<8x128xi1>, vector<8x128xf32>
    %c4_i32 = arith.constant 4 : i32
    %61 = tpu.dynamic_rotate %60 by %c4_i32 dim 1 : vector<8x128xf32>, i32 -> vector<8x128xf32>
    %c4_i32_41 = arith.constant 4 : i32
    %62 = vector.broadcast %c4_i32_41 : i32 to vector<8x128xi32>
    %63 = arith.cmpi sge, %52, %62 : vector<8x128xi32>
    %cst_42 = arith.constant 0.000000e+00 : f32
    %64 = vector.broadcast %cst_42 : f32 to vector<8x128xf32>
    %65 = arith.select %63, %61, %64 : vector<8x128xi1>, vector<8x128xf32>
    %cst_43 = arith.constant 0.000000e+00 : f32
    %66 = vector.broadcast %cst_43 : f32 to vector<8x128xf32>
    %67 = arith.cmpf one, %60, %66 : vector<8x128xf32>
    %68 = arith.select %67, %60, %65 : vector<8x128xi1>, vector<8x128xf32>
    %c8_i32 = arith.constant 8 : i32
    %69 = tpu.dynamic_rotate %68 by %c8_i32 dim 1 : vector<8x128xf32>, i32 -> vector<8x128xf32>
    %c8_i32_44 = arith.constant 8 : i32
    %70 = vector.broadcast %c8_i32_44 : i32 to vector<8x128xi32>
    %71 = arith.cmpi sge, %52, %70 : vector<8x128xi32>
    %cst_45 = arith.constant 0.000000e+00 : f32
    %72 = vector.broadcast %cst_45 : f32 to vector<8x128xf32>
    %73 = arith.select %71, %69, %72 : vector<8x128xi1>, vector<8x128xf32>
    %cst_46 = arith.constant 0.000000e+00 : f32
    %74 = vector.broadcast %cst_46 : f32 to vector<8x128xf32>
    %75 = arith.cmpf one, %68, %74 : vector<8x128xf32>
    %76 = arith.select %75, %68, %73 : vector<8x128xi1>, vector<8x128xf32>
    %c16_i32 = arith.constant 16 : i32
    %77 = tpu.dynamic_rotate %76 by %c16_i32 dim 1 : vector<8x128xf32>, i32 -> vector<8x128xf32>
    %c16_i32_47 = arith.constant 16 : i32
    %78 = vector.broadcast %c16_i32_47 : i32 to vector<8x128xi32>
    %79 = arith.cmpi sge, %52, %78 : vector<8x128xi32>
    %cst_48 = arith.constant 0.000000e+00 : f32
    %80 = vector.broadcast %cst_48 : f32 to vector<8x128xf32>
    %81 = arith.select %79, %77, %80 : vector<8x128xi1>, vector<8x128xf32>
    %cst_49 = arith.constant 0.000000e+00 : f32
    %82 = vector.broadcast %cst_49 : f32 to vector<8x128xf32>
    %83 = arith.cmpf one, %76, %82 : vector<8x128xf32>
    %84 = arith.select %83, %76, %81 : vector<8x128xi1>, vector<8x128xf32>
    %c32_i32 = arith.constant 32 : i32
    %85 = tpu.dynamic_rotate %84 by %c32_i32 dim 1 : vector<8x128xf32>, i32 -> vector<8x128xf32>
    %c32_i32_50 = arith.constant 32 : i32
    %86 = vector.broadcast %c32_i32_50 : i32 to vector<8x128xi32>
    %87 = arith.cmpi sge, %52, %86 : vector<8x128xi32>
    %cst_51 = arith.constant 0.000000e+00 : f32
    %88 = vector.broadcast %cst_51 : f32 to vector<8x128xf32>
    %89 = arith.select %87, %85, %88 : vector<8x128xi1>, vector<8x128xf32>
    %cst_52 = arith.constant 0.000000e+00 : f32
    %90 = vector.broadcast %cst_52 : f32 to vector<8x128xf32>
    %91 = arith.cmpf one, %84, %90 : vector<8x128xf32>
    %92 = arith.select %91, %84, %89 : vector<8x128xi1>, vector<8x128xf32>
    %c64_i32 = arith.constant 64 : i32
    %93 = tpu.dynamic_rotate %92 by %c64_i32 dim 1 : vector<8x128xf32>, i32 -> vector<8x128xf32>
    %c64_i32_53 = arith.constant 64 : i32
    %94 = vector.broadcast %c64_i32_53 : i32 to vector<8x128xi32>
    %95 = arith.cmpi sge, %52, %94 : vector<8x128xi32>
    %cst_54 = arith.constant 0.000000e+00 : f32
    %96 = vector.broadcast %cst_54 : f32 to vector<8x128xf32>
    %97 = arith.select %95, %93, %96 : vector<8x128xi1>, vector<8x128xf32>
    %cst_55 = arith.constant 0.000000e+00 : f32
    %98 = vector.broadcast %cst_55 : f32 to vector<8x128xf32>
    %99 = arith.cmpf one, %92, %98 : vector<8x128xf32>
    %100 = arith.select %99, %92, %97 : vector<8x128xi1>, vector<8x128xf32>
    %101 = vector.extract_strided_slice %100 {offsets = [0, 126], sizes = [8, 2], strides = [1, 1]} : vector<8x128xf32> to vector<8x2xf32>
    %cst_56 = arith.constant 0.000000e+00 : f32
    %102 = vector.broadcast %cst_56 : f32 to vector<8x126xf32>
    %103 = tpu.concatenate %101, %102 in 1 : vector<8x2xf32>, vector<8x126xf32> -> vector<8x128xf32>
    %c0_57 = arith.constant 0 : index
    %c0_58 = arith.constant 0 : index
    %104 = vector.load %arg13[%c0_57, %c0_58] : memref<8x128xf32, #tpu.memory_space<vmem>>, vector<8x128xf32>
    tpu.vector_store %arg13[%c0_57, %c0_58], %103 {strides = array<i32>} : memref<8x128xf32, #tpu.memory_space<vmem>>, vector<8x128xf32>,
    %c0_59 = arith.constant 0 : index
    %c0_60 = arith.constant 0 : index
    %105 = vector.load %arg11[%c0_59, %c0_60] : memref<8x128xf32, #tpu.memory_space<vmem>>, vector<8x128xf32>
    tpu.vector_store %arg11[%c0_59, %c0_60], %100 {strides = array<i32>} : memref<8x128xf32, #tpu.memory_space<vmem>>, vector<8x128xf32>,
    return
  }
  func.func @transform_0(%arg0: i32) -> (i32, i32) {
    %c0_i32 = arith.constant 0 : i32
    %c0_i32_0 = arith.constant 0 : i32
    return %c0_i32, %arg0 : i32, i32
  }
  func.func @transform_1(%arg0: i32) -> (i32, i32, i32) {
    %c0_i32 = arith.constant 0 : i32
    %c0_i32_0 = arith.constant 0 : i32
    %c0_i32_1 = arith.constant 0 : i32
    return %arg0, %c0_i32, %c0_i32_0 : i32, i32, i32
  }
  func.func @transform_2(%arg0: i32) -> (i32, i32) {
    %c0_i32 = arith.constant 0 : i32
    %c0_i32_0 = arith.constant 0 : i32
    %c0_i32_1 = arith.constant 0 : i32
    return %c0_i32, %c0_i32_0 : i32, i32
  }
  func.func @transform_3(%arg0: i32) -> (i32, i32) {
    %c0_i32 = arith.constant 0 : i32
    %c0_i32_0 = arith.constant 0 : i32
    %c0_i32_1 = arith.constant 0 : i32
    return %c0_i32, %c0_i32_0 : i32, i32
  }
  func.func @transform_4(%arg0: i32) -> (i32, i32) {
    %c0_i32 = arith.constant 0 : i32
    %c0_i32_0 = arith.constant 0 : i32
    %c0_i32_1 = arith.constant 0 : i32
    return %c0_i32, %c0_i32_0 : i32, i32
  }
  func.func @transform_5(%arg0: i32) -> (i32, i32) {
    %c0_i32 = arith.constant 0 : i32
    %c0_i32_0 = arith.constant 0 : i32
    %c0_i32_1 = arith.constant 0 : i32
    return %c0_i32, %c0_i32_0 : i32, i32
  }
  func.func @transform_6(%arg0: i32) -> (i32, i32) {
    %c0_i32 = arith.constant 0 : i32
    %c0_i32_0 = arith.constant 0 : i32
    %c0_i32_1 = arith.constant 0 : i32
    return %c0_i32, %c0_i32_0 : i32, i32
  }
  func.func @transform_7(%arg0: i32) -> (i32, i32) {
    %c0_i32 = arith.constant 0 : i32
    %c0_i32_0 = arith.constant 0 : i32
    %c0_i32_1 = arith.constant 0 : i32
    return %c0_i32, %c0_i32_0 : i32, i32
  }
  func.func @transform_8(%arg0: i32) -> (i32, i32) {
    %c0_i32 = arith.constant 0 : i32
    %c0_i32_0 = arith.constant 0 : i32
    %c0_i32_1 = arith.constant 0 : i32
    return %c0_i32, %c0_i32_0 : i32, i32
  }
  func.func @transform_9(%arg0: i32) -> (i32, i32) {
    %c0_i32 = arith.constant 0 : i32
    %c0_i32_0 = arith.constant 0 : i32
    %c0_i32_1 = arith.constant 0 : i32
    return %c0_i32, %c0_i32_0 : i32, i32
  }
  func.func @transform_10(%arg0: i32) -> (i32, i32) {
    %c0_i32 = arith.constant 0 : i32
    %c0_i32_0 = arith.constant 0 : i32
    return %c0_i32, %arg0 : i32, i32
  }
}

</mosaic_0001>

<llo_original>
// kernel: tpu_custom_call.1
$region0: #{tpu_custom_call.1}
  #allocation0 [shape = 'u32[]', space=smem, size = 0x4, offset = 0x4, fixed_abs, tag = 'smem constant byte address 0x4 - core index']
  #allocation1 [shape = 'u32[144,128]{1,0:T(1,128)}', space=vmem, size = 0x12000, scoped, tag = 'internal scratch']
  %s0 = inlined_call_operand.hbm [shape: f32[8,128], index: 0, kind: input, shape index: {}]
  %s1 = inlined_call_operand.hbm [shape: f32[8,128], index: 1, kind: output, shape index: {}]
  %s2 = sld [smem:[#allocation0]]
  $region18: #{tpu_custom_call.1} parent=0
    _
  %s4 = ssub.s32 1, %s2
  %s5 = scalar_select 0, %s4, %s2
  $region1: #{tpu_custom_call.1} parent=0
    #allocation2 [shape = 'u8[4096]{0}', space=vmem, size = 0x1000, scoped, tag = 'input window, operand 0, single buffered']
    #allocation3 [shape = 's32[1]{0}', space=sflag, size = 0x4, scoped, tag = 'scoped memory for tpu_custom_call.1']
    #allocation4 [shape = 's32[1]{0}', space=sflag, size = 0x4, scoped, tag = 'scoped memory for tpu_custom_call.1']
    #allocation5 [shape = 'u8[4096]{0}', space=vmem, size = 0x1000, scoped, tag = 'output window, operand 0, single buffered']
    %6 = vsyncpa [#allocation3], 0
    %7 = vsyncpa [#allocation4], 0
    // Predicated region
    $region2: #{tpu_custom_call.1} parent=1 // pred_check
      _
    $region3: #{tpu_custom_call.1} parent=1 // pred_check_branch
      %9 = sbr.rel (0) target = $region5
    $region4: #{tpu_custom_call.1} parent=1 // pred_region
      %s11 = ssub.s32 128, 128
      %12 = vsyncadd [#allocation3], %s11
      %s14 = sshll.u32 [#allocation2], 4
      %s15 = int_to_ptr.vmem [resolvable:$true] %s14
      %17 = dma.hbm_to_vmem [thread:$0]  %s0, 128, %s15, [#allocation3]
    $region5: #{tpu_custom_call.1} parent=1 // pred_fallthru
      _
    // Predicated region
    $region6: #{tpu_custom_call.1} parent=1 // pred_check
      _
    $region7: #{tpu_custom_call.1} parent=1 // pred_check_branch
      %19 = sbr.rel (0) target = $region9
    $region8: #{tpu_custom_call.1} parent=1 // pred_region
      %20 = dma.done [#allocation3], 128
    $region9: #{tpu_custom_call.1} parent=1 // pred_fallthru
      _
    %v21 = vld [vmem:[#allocation2] sm:$0xff]
    %22 = vrot.lane.b32.xlu0 %v21, 1
    %v23 = vpop.permute.xlu0 %22
    %24 = vst [vmem:[#allocation5] sm:$0xff] %v23
    // Predicated region
    $region10: #{tpu_custom_call.1} parent=1 // pred_check
      _
    $region11: #{tpu_custom_call.1} parent=1 // pred_check_branch
      %26 = sbr.rel (0) target = $region13
    $region12: #{tpu_custom_call.1} parent=1 // pred_region
      %s28 = ssub.s32 128, 128
      %29 = vsyncadd [#allocation4], %s28
      %s31 = sshll.u32 [#allocation5], 4
      %s32 = int_to_ptr.vmem [resolvable:$true] %s31
      %34 = dma.vmem_to_hbm [thread:$0]  %s32, 128, %s1, [#allocation4]
    $region13: #{tpu_custom_call.1} parent=1 // pred_fallthru
      _
    // Predicated region
    $region14: #{tpu_custom_call.1} parent=1 // pred_check
      _
    $region15: #{tpu_custom_call.1} parent=1 // pred_check_branch
      %36 = sbr.rel (0) target = $region17
    $region16: #{tpu_custom_call.1} parent=1 // pred_region
      %37 = dma.done [#allocation4], 128
    $region17: #{tpu_custom_call.1} parent=1 // pred_fallthru
      _
    %38 = vsyncpa [#allocation3], 1
    %39 = vsyncpa [#allocation4], 1

// kernel: tpu_custom_call.1
$region0: #{tpu_custom_call.1}
  #allocation0 [shape = 'u32[]', space=smem, size = 0x4, offset = 0x4, fixed_abs, tag = 'smem constant byte address 0x4 - core index']
  #allocation1 [shape = 'u32[144,128]{1,0:T(1,128)}', space=vmem, size = 0x12000, scoped, tag = 'internal scratch']
  #allocation2 [shape = 'f32[128,128]{1,0:T(8,128)}', space=vmem, size = 0x10000, scoped, tag = 'scratch operand']
  #allocation3 [shape = 'f32[8,128]{1,0:T(8,128)}', space=vmem, size = 0x1000, scoped, tag = 'scratch operand']
  %s0 = inlined_call_operand.vmem [shape: f32[16,128], index: 0, kind: input, shape index: {}]
  %s1 = inlined_call_operand.vmem [shape: f32[1,16,128], index: 1, kind: input, shape index: {}]
  %s2 = inlined_call_operand.vmem [shape: f32[16,128], index: 2, kind: input, shape index: {}]
  %s3 = inlined_call_operand.vmem [shape: f32[16,1], index: 3, kind: input, shape index: {}]
  %s4 = inlined_call_operand.vmem [shape: f32[8,16], index: 4, kind: input, shape index: {}]
  %s5 = inlined_call_operand.vmem [shape: f32[8,1], index: 5, kind: input, shape index: {}]
  %s6 = inlined_call_operand.vmem [shape: f32[8,8], index: 6, kind: input, shape index: {}]
  %s7 = inlined_call_operand.vmem [shape: f32[8,1], index: 7, kind: input, shape index: {}]
  %s8 = inlined_call_operand.vmem [shape: f32[8,8], index: 8, kind: input, shape index: {}]
  %s9 = inlined_call_operand.vmem [shape: f32[8,1], index: 9, kind: input, shape index: {}]
  %s10 = inlined_call_operand.hbm [shape: f32[8,128], index: 10, kind: output, shape index: {}]
  %s11 = sld [smem:[#allocation0]]
  $region54: #{tpu_custom_call.1} parent=0
    _
  %s13 = ssub.s32 1, %s11
  %s14 = scalar_select 0, %s13, %s11
  $region1: #{tpu_custom_call.1} parent=0
    #allocation4 [shape = 'u8[4096]{0}', space=vmem, size = 0x1000, scoped, tag = 'output window, operand 0, single buffered']
    #allocation5 [shape = 's32[1]{0}', space=sflag, size = 0x4, scoped, tag = 'scoped memory for tpu_custom_call.1']
    %15 = vsyncpa [#allocation5], 0
    // Predicated region
    $region2: #{tpu_custom_call.1} parent=1 // pred_check
      _
    $region3: #{tpu_custom_call.1} parent=1 // pred_check_branch
      %17 = sbr.rel (0) target = $region5
    $region4: #{tpu_custom_call.1} parent=1 // pred_region
      _
    $region5: #{tpu_custom_call.1} parent=1 // pred_fallthru
      _
    // Predicated region
    $region6: #{tpu_custom_call.1} parent=1 // pred_check
      _
    $region7: #{tpu_custom_call.1} parent=1 // pred_check_branch
      %19 = sbr.rel (0) target = $region9
    $region8: #{tpu_custom_call.1} parent=1 // pred_region
      _
    $region9: #{tpu_custom_call.1} parent=1 // pred_fallthru
      _
    // Predicated region
    $region10: #{tpu_custom_call.1} parent=1 // pred_check
      _
    $region11: #{tpu_custom_call.1} parent=1 // pred_check_branch
      %21 = sbr.rel (0) target = $region13
    $region12: #{tpu_custom_call.1} parent=1 // pred_region
      _
    $region13: #{tpu_custom_call.1} parent=1 // pred_fallthru
      _
    // Predicated region
    $region14: #{tpu_custom_call.1} parent=1 // pred_check
      _
    $region15: #{tpu_custom_call.1} parent=1 // pred_check_branch
      %23 = sbr.rel (0) target = $region17
    $region16: #{tpu_custom_call.1} parent=1 // pred_region
      _
    $region17: #{tpu_custom_call.1} parent=1 // pred_fallthru
      _
    // Predicated region
    $region18: #{tpu_custom_call.1} parent=1 // pred_check
      _
    $region19: #{tpu_custom_call.1} parent=1 // pred_check_branch
      %25 = sbr.rel (0) target = $region21
    $region20: #{tpu_custom_call.1} parent=1 // pred_region
      _
    $region21: #{tpu_custom_call.1} parent=1 // pred_fallthru
      _
    // Predicated region
    $region22: #{tpu_custom_call.1} parent=1 // pred_check
      _
    $region23: #{tpu_custom_call.1} parent=1 // pred_check_branch
      %27 = sbr.rel (0) target = $region25
    $region24: #{tpu_custom_call.1} parent=1 // pred_region
      _
    $region25: #{tpu_custom_call.1} parent=1 // pred_fallthru
      _
    // Predicated region
    $region26: #{tpu_custom_call.1} parent=1 // pred_check
      _
    $region27: #{tpu_custom_call.1} parent=1 // pred_check_branch
      %29 = sbr.rel (0) target = $region29
    $region28: #{tpu_custom_call.1} parent=1 // pred_region
      _
    $region29: #{tpu_custom_call.1} parent=1 // pred_fallthru
      _
    // Predicated region
    $region30: #{tpu_custom_call.1} parent=1 // pred_check
      _
    $region31: #{tpu_custom_call.1} parent=1 // pred_check_branch
      %31 = sbr.rel (0) target = $region33
    $region32: #{tpu_custom_call.1} parent=1 // pred_region
      _
    $region33: #{tpu_custom_call.1} parent=1 // pred_fallthru
      _
    // Predicated region
    $region34: #{tpu_custom_call.1} parent=1 // pred_check
      _
    $region35: #{tpu_custom_call.1} parent=1 // pred_check_branch
      %33 = sbr.rel (0) target = $region37
    $region36: #{tpu_custom_call.1} parent=1 // pred_region
      _
    $region37: #{tpu_custom_call.1} parent=1 // pred_fallthru
      _
    // Predicated region
    $region38: #{tpu_custom_call.1} parent=1 // pred_check
      _
    $region39: #{tpu_custom_call.1} parent=1 // pred_check_branch
      %35 = sbr.rel (0) target = $region41
    $region40: #{tpu_custom_call.1} parent=1 // pred_region
      _
    $region41: #{tpu_custom_call.1} parent=1 // pred_fallthru
      _
    %v36 = vld [vmem:[%s1] sm:$0xff]
    %v37 = vld [vmem:[%s1 + $0x8] sm:$0xff]
    %v38 = vld [vmem:[%s0] sm:$0xff]
    %v39 = vld [vmem:[%s0 + $0x8] sm:$0xff]
    %44 = vrot.lane.b32.xlu0 %v36, 16
    %v45 = vpop.permute.xlu0 %44
    %46 = vrot.lane.b32.xlu0 %v38, 16
    %v47 = vpop.permute.xlu0 %46
    %48 = vrot.lane.b32.xlu0 %v37, 16
    %v49 = vpop.permute.xlu0 %48
    %50 = vrot.lane.b32.xlu0 %v39, 16
    %v51 = vpop.permute.xlu0 %50
    %vm52 = vcmask 130048
    %v53 = vsel %vm52, %v45, %v47
    %v54 = vsel %vm52, %v49, %v51
    %57 = vst [vmem:[#allocation2] sm:$0xff] %v53
    %58 = vst [vmem:[#allocation2 + $0x8] sm:$0xff] %v54
    %59 = vrot.lane.b32.xlu0 %v36, 14
    %v60 = vpop.permute.xlu0 %59
    %61 = vrot.lane.b32.xlu0 %v38, 14
    %v62 = vpop.permute.xlu0 %61
    %63 = vrot.lane.b32.xlu0 %v37, 14
    %v64 = vpop.permute.xlu0 %63
    %65 = vrot.lane.b32.xlu0 %v39, 14
    %v66 = vpop.permute.xlu0 %65
    %vm67 = vcmask 113664
    %v68 = vsel %vm67, %v60, %v62
    %v69 = vsel %vm67, %v64, %v66
    %72 = vst [vmem:[#allocation2 + $0x10] sm:$0xff] %v68
    %73 = vst [vmem:[#allocation2 + $0x18] sm:$0xff] %v69
    %74 = vrot.lane.b32.xlu0 %v36, 12
    %v75 = vpop.permute.xlu0 %74
    %76 = vrot.lane.b32.xlu0 %v38, 12
    %v77 = vpop.permute.xlu0 %76
    %78 = vrot.lane.b32.xlu0 %v37, 12
    %v79 = vpop.permute.xlu0 %78
    %80 = vrot.lane.b32.xlu0 %v39, 12
    %v81 = vpop.permute.xlu0 %80
    %vm82 = vcmask 97280
    %v83 = vsel %vm82, %v75, %v77
    %v84 = vsel %vm82, %v79, %v81
    %87 = vst [vmem:[#allocation2 + $0x20] sm:$0xff] %v83
    %88 = vst [vmem:[#allocation2 + $0x28] sm:$0xff] %v84
    %89 = vrot.lane.b32.xlu0 %v36, 10
    %v90 = vpop.permute.xlu0 %89
    %91 = vrot.lane.b32.xlu0 %v38, 10
    %v92 = vpop.permute.xlu0 %91
    %93 = vrot.lane.b32.xlu0 %v37, 10
    %v94 = vpop.permute.xlu0 %93
    %95 = vrot.lane.b32.xlu0 %v39, 10
    %v96 = vpop.permute.xlu0 %95
    %vm97 = vcmask 80896
    %v98 = vsel %vm97, %v90, %v92
    %v99 = vsel %vm97, %v94, %v96
    %102 = vst [vmem:[#allocation2 + $0x30] sm:$0xff] %v98
    %103 = vst [vmem:[#allocation2 + $0x38] sm:$0xff] %v99
    %104 = vrot.lane.b32.xlu0 %v36, 8
    %v105 = vpop.permute.xlu0 %104
    %106 = vrot.lane.b32.xlu0 %v38, 8
    %v107 = vpop.permute.xlu0 %106
    %108 = vrot.lane.b32.xlu0 %v37, 8
    %v109 = vpop.permute.xlu0 %108
    %110 = vrot.lane.b32.xlu0 %v39, 8
    %v111 = vpop.permute.xlu0 %110
    %vm112 = vcmask 64512
    %v113 = vsel %vm112, %v105, %v107
    %v114 = vsel %vm112, %v109, %v111
    %117 = vst [vmem:[#allocation2 + $0x40] sm:$0xff] %v113
    %118 = vst [vmem:[#allocation2 + $0x48] sm:$0xff] %v114
    %119 = vrot.lane.b32.xlu0 %v36, 6
    %v120 = vpop.permute.xlu0 %119
    %121 = vrot.lane.b32.xlu0 %v38, 6
    %v122 = vpop.permute.xlu0 %121
    %123 = vrot.lane.b32.xlu0 %v37, 6
    %v124 = vpop.permute.xlu0 %123
    %125 = vrot.lane.b32.xlu0 %v39, 6
    %v126 = vpop.permute.xlu0 %125
    %vm127 = vcmask 48128
    %v128 = vsel %vm127, %v120, %v122
    %v129 = vsel %vm127, %v124, %v126
    %132 = vst [vmem:[#allocation2 + $0x50] sm:$0xff] %v128
    %133 = vst [vmem:[#allocation2 + $0x58] sm:$0xff] %v129
    %134 = vrot.lane.b32.xlu0 %v36, 4
    %v135 = vpop.permute.xlu0 %134
    %136 = vrot.lane.b32.xlu0 %v38, 4
    %v137 = vpop.permute.xlu0 %136
    %138 = vrot.lane.b32.xlu0 %v37, 4
    %v139 = vpop.permute.xlu0 %138
    %140 = vrot.lane.b32.xlu0 %v39, 4
    %v141 = vpop.permute.xlu0 %140
    %vm142 = vcmask 31744
    %v143 = vsel %vm142, %v135, %v137
    %v144 = vsel %vm142, %v139, %v141
    %147 = vst [vmem:[#allocation2 + $0x60] sm:$0xff] %v143
    %148 = vst [vmem:[#allocation2 + $0x68] sm:$0xff] %v144
    %149 = vrot.lane.b32.xlu0 %v36, 2
    %v150 = vpop.permute.xlu0 %149
    %151 = vrot.lane.b32.xlu0 %v38, 2
    %v152 = vpop.permute.xlu0 %151
    %153 = vrot.lane.b32.xlu0 %v37, 2
    %v154 = vpop.permute.xlu0 %153
    %155 = vrot.lane.b32.xlu0 %v39, 2
    %v156 = vpop.permute.xlu0 %155
    %vm157 = vcmask 15360
    %v158 = vsel %vm157, %v150, %v152
    %v159 = vsel %vm157, %v154, %v156
    %162 = vst [vmem:[#allocation2 + $0x70] sm:$0xff] %v158
    %163 = vst [vmem:[#allocation2 + $0x78] sm:$0xff] %v159
    %v164 = vld [vmem:[%s2] sm:$0xff]
    %v165 = vld [vmem:[%s2 + $0x8] sm:$0xff]
    %v166 = vld [vmem:[#allocation2] sm:$0xff]
    %v167 = vld [vmem:[#allocation2 + $0x8] sm:$0xff]
    %v168 = vld [vmem:[#allocation2 + $0x10] sm:$0xff]
    %v169 = vld [vmem:[#allocation2 + $0x18] sm:$0xff]
    %v170 = vld [vmem:[#allocation2 + $0x20] sm:$0xff]
    %v171 = vld [vmem:[#allocation2 + $0x28] sm:$0xff]
    %v172 = vld [vmem:[#allocation2 + $0x30] sm:$0xff]
    %v173 = vld [vmem:[#allocation2 + $0x38] sm:$0xff]
    %v174 = vld [vmem:[#allocation2 + $0x40] sm:$0xff]
    %v175 = vld [vmem:[#allocation2 + $0x48] sm:$0xff]
    %v176 = vld [vmem:[#allocation2 + $0x50] sm:$0xff]
    %v177 = vld [vmem:[#allocation2 + $0x58] sm:$0xff]
    %v178 = vld [vmem:[#allocation2 + $0x60] sm:$0xff]
    %v179 = vld [vmem:[#allocation2 + $0x68] sm:$0xff]
    %v180 = vld [vmem:[#allocation2 + $0x70] sm:$0xff]
    %v181 = vld [vmem:[#allocation2 + $0x78] sm:$0xff]
    %v182 = vld [vmem:[%s3] sm:$0xff]
    %v183 = vld [vmem:[%s3 + $0x8] sm:$0xff]
    %185 = vset.pattern.permute.xlu0 0
    %186 = vperm.xlu0 %185, %v182
    %v187 = vpop.permute.xlu0 %186
    %190 = vset.pattern.permute.xlu0 0
    %191 = vperm.xlu0 %190, %v183
    %v192 = vpop.permute.xlu0 %191
    %194 = vmatprep.subr.mxu0 0.0
    %195 = vmatpush1.msra.mxu0 %v166
    %196 = vmatprep.subr.mxu0 0.0
    %197 = vmatpush1.msra.mxu0 %v167
    %198 = vmatprep.subr.mxu0 0.0
    %199 = vmatpush1.msra.mxu0 %v168
    %200 = vmatprep.subr.mxu0 0.0
    %201 = vmatpush1.msra.mxu0 %v169
    %202 = vmatprep.subr.mxu0 0.0
    %203 = vmatpush1.msra.mxu0 %v170
    %204 = vmatprep.subr.mxu0 0.0
    %205 = vmatpush1.msra.mxu0 %v171
    %206 = vmatprep.subr.mxu0 0.0
    %207 = vmatpush1.msra.mxu0 %v172
    %208 = vmatprep.subr.mxu0 0.0
    %209 = vmatpush1.msra.mxu0 %v173
    %210 = vmatprep.subr.mxu0 0.0
    %211 = vmatpush1.msra.mxu0 %v174
    %212 = vmatprep.subr.mxu0 0.0
    %213 = vmatpush1.msra.mxu0 %v175
    %214 = vmatprep.subr.mxu0 0.0
    %215 = vmatpush1.msra.mxu0 %v176
    %216 = vmatprep.subr.mxu0 0.0
    %217 = vmatpush1.msra.mxu0 %v177
    %218 = vmatprep.subr.mxu0 0.0
    %219 = vmatpush1.msra.mxu0 %v178
    %220 = vmatprep.subr.mxu0 0.0
    %221 = vmatpush1.msra.mxu0 %v179
    %222 = vmatprep.subr.mxu0 0.0
    %223 = vmatpush1.msra.mxu0 %v180
    %224 = vmatprep.subr.mxu0 0.0
    %225 = vmatpush1.msra.mxu0 %v181
    %226 = vmatprep.subr.mxu0 0.0
    %227 = vmatpush1.msra.mxu0 0.0
    %228 = vmatprep.subr.mxu0 0.0
    %229 = vmatpush1.msra.mxu0 0.0
    %230 = vmatprep.subr.mxu0 0.0
    %231 = vmatpush1.msra.mxu0 0.0
    %232 = vmatprep.subr.mxu0 0.0
    %233 = vmatpush1.msra.mxu0 0.0
    %234 = vmatprep.subr.mxu0 0.0
    %235 = vmatpush1.msra.mxu0 0.0
    %236 = vmatprep.subr.mxu0 0.0
    %237 = vmatpush1.msra.mxu0 0.0
    %238 = vmatprep.subr.mxu0 0.0
    %239 = vmatpush1.msra.mxu0 0.0
    %240 = vmatprep.subr.mxu0 0.0
    %241 = vmatpush1.msra.mxu0 0.0
    %242 = vmatprep.subr.mxu0 0.0
    %243 = vmatpush1.msra.mxu0 0.0
    %244 = vmatprep.subr.mxu0 0.0
    %245 = vmatpush1.msra.mxu0 0.0
    %246 = vmatprep.subr.mxu0 0.0
    %247 = vmatpush1.msra.mxu0 0.0
    %248 = vmatprep.subr.mxu0 0.0
    %249 = vmatpush1.msra.mxu0 0.0
    %250 = vmatprep.subr.mxu0 0.0
    %251 = vmatpush1.msra.mxu0 0.0
    %252 = vmatprep.subr.mxu0 0.0
    %253 = vmatpush1.msra.mxu0 0.0
    %254 = vmatprep.subr.mxu0 0.0
    %255 = vmatpush1.msra.mxu0 0.0
    %256 = vmatprep.subr.mxu0 0.0
    %257 = vmatpush1.msra.mxu0 0.0
    %258 = vmatprep.mubr.f32.mxu0 0.0
    %259 = vmatmul.mubr.f32.gmra.mrb[0].mxu0 %v164
    %v260 = vpop.f32.mrb[0].mxu0
    %v261 = vadd.f32 %v187, %v260
    %v262 = vpop.f32.mrb[0].mxu0
    %263 = vmatprep.mubr.f32.mxu0 0.0
    %264 = vmatmul.mubr.f32.gmra.mrb[0].mxu0 %v165
    %v265 = vpop.f32.mrb[0].mxu0
    %v266 = vadd.f32 %v192, %v265
    %v267 = vpop.f32.mrb[0].mxu0
    %268 = vdwg.mxu0
    %v269 = vtanh.pop %v261
    %v270 = vtanh.pop %v266
    %v271 = vld [vmem:[%s4] sm:$0xff]
    %v272 = vld [vmem:[%s5] sm:$0xff]
    %274 = vset.pattern.permute.xlu0 0
    %275 = vperm.xlu0 %274, %v272
    %v276 = vpop.permute.xlu0 %275
    %v279 = vsel %vm52, %v271, 0
    %281 = vmatprep.subr.mxu0 0.0
    %282 = vmatpush1.msra.mxu0 %v269
    %283 = vmatprep.subr.mxu0 0.0
    %284 = vmatpush1.msra.mxu0 %v270
    %285 = vmatprep.subr.mxu0 0.0
    %286 = vmatpush1.msra.mxu0 0.0
    %287 = vmatprep.subr.mxu0 0.0
    %288 = vmatpush1.msra.mxu0 0.0
    %289 = vmatprep.subr.mxu0 0.0
    %290 = vmatpush1.msra.mxu0 0.0
    %291 = vmatprep.subr.mxu0 0.0
    %292 = vmatpush1.msra.mxu0 0.0
    %293 = vmatprep.subr.mxu0 0.0
    %294 = vmatpush1.msra.mxu0 0.0
    %295 = vmatprep.subr.mxu0 0.0
    %296 = vmatpush1.msra.mxu0 0.0
    %297 = vmatprep.subr.mxu0 0.0
    %298 = vmatpush1.msra.mxu0 0.0
    %299 = vmatprep.subr.mxu0 0.0
    %300 = vmatpush1.msra.mxu0 0.0
    %301 = vmatprep.subr.mxu0 0.0
    %302 = vmatpush1.msra.mxu0 0.0
    %303 = vmatprep.subr.mxu0 0.0
    %304 = vmatpush1.msra.mxu0 0.0
    %305 = vmatprep.subr.mxu0 0.0
    %306 = vmatpush1.msra.mxu0 0.0
    %307 = vmatprep.subr.mxu0 0.0
    %308 = vmatpush1.msra.mxu0 0.0
    %309 = vmatprep.subr.mxu0 0.0
    %310 = vmatpush1.msra.mxu0 0.0
    %311 = vmatprep.subr.mxu0 0.0
    %312 = vmatpush1.msra.mxu0 0.0
    %313 = vmatprep.subr.mxu0 0.0
    %314 = vmatpush1.msra.mxu0 0.0
    %315 = vmatprep.subr.mxu0 0.0
    %316 = vmatpush1.msra.mxu0 0.0
    %317 = vmatprep.subr.mxu0 0.0
    %318 = vmatpush1.msra.mxu0 0.0
    %319 = vmatprep.subr.mxu0 0.0
    %320 = vmatpush1.msra.mxu0 0.0
    %321 = vmatprep.subr.mxu0 0.0
    %322 = vmatpush1.msra.mxu0 0.0
    %323 = vmatprep.subr.mxu0 0.0
    %324 = vmatpush1.msra.mxu0 0.0
    %325 = vmatprep.subr.mxu0 0.0
    %326 = vmatpush1.msra.mxu0 0.0
    %327 = vmatprep.subr.mxu0 0.0
    %328 = vmatpush1.msra.mxu0 0.0
    %329 = vmatprep.subr.mxu0 0.0
    %330 = vmatpush1.msra.mxu0 0.0
    %331 = vmatprep.subr.mxu0 0.0
    %332 = vmatpush1.msra.mxu0 0.0
    %333 = vmatprep.subr.mxu0 0.0
    %334 = vmatpush1.msra.mxu0 0.0
    %335 = vmatprep.subr.mxu0 0.0
    %336 = vmatpush1.msra.mxu0 0.0
    %337 = vmatprep.subr.mxu0 0.0
    %338 = vmatpush1.msra.mxu0 0.0
    %339 = vmatprep.subr.mxu0 0.0
    %340 = vmatpush1.msra.mxu0 0.0
    %341 = vmatprep.subr.mxu0 0.0
    %342 = vmatpush1.msra.mxu0 0.0
    %343 = vmatprep.subr.mxu0 0.0
    %344 = vmatpush1.msra.mxu0 0.0
    %345 = vmatprep.mubr.f32.mxu0 0.0
    %346 = vmatmul.mubr.f32.gmra.mrb[0].mxu0 %v279
    %v347 = vpop.f32.mrb[0].mxu0
    %v348 = vadd.f32 %v276, %v347
    %v349 = vpop.f32.mrb[0].mxu0
    %350 = vdwg.mxu0
    %v351 = vtanh.pop %v348
    %v352 = vld [vmem:[%s6] sm:$0xff]
    %v353 = vld [vmem:[%s7] sm:$0xff]
    %355 = vset.pattern.permute.xlu0 0
    %356 = vperm.xlu0 %355, %v353
    %v357 = vpop.permute.xlu0 %356
    %v360 = vsel %vm112, %v352, 0
    %362 = vmatprep.subr.mxu0 0.0
    %363 = vmatpush1.msra.mxu0 %v351
    %364 = vmatprep.subr.mxu0 0.0
    %365 = vmatpush1.msra.mxu0 0.0
    %366 = vmatprep.subr.mxu0 0.0
    %367 = vmatpush1.msra.mxu0 0.0
    %368 = vmatprep.subr.mxu0 0.0
    %369 = vmatpush1.msra.mxu0 0.0
    %370 = vmatprep.subr.mxu0 0.0
    %371 = vmatpush1.msra.mxu0 0.0
    %372 = vmatprep.subr.mxu0 0.0
    %373 = vmatpush1.msra.mxu0 0.0
    %374 = vmatprep.subr.mxu0 0.0
    %375 = vmatpush1.msra.mxu0 0.0
    %376 = vmatprep.subr.mxu0 0.0
    %377 = vmatpush1.msra.mxu0 0.0
    %378 = vmatprep.subr.mxu0 0.0
    %379 = vmatpush1.msra.mxu0 0.0
    %380 = vmatprep.subr.mxu0 0.0
    %381 = vmatpush1.msra.mxu0 0.0
    %382 = vmatprep.subr.mxu0 0.0
    %383 = vmatpush1.msra.mxu0 0.0
    %384 = vmatprep.subr.mxu0 0.0
    %385 = vmatpush1.msra.mxu0 0.0
    %386 = vmatprep.subr.mxu0 0.0
    %387 = vmatpush1.msra.mxu0 0.0
    %388 = vmatprep.subr.mxu0 0.0
    %389 = vmatpush1.msra.mxu0 0.0
    %390 = vmatprep.subr.mxu0 0.0
    %391 = vmatpush1.msra.mxu0 0.0
    %392 = vmatprep.subr.mxu0 0.0
    %393 = vmatpush1.msra.mxu0 0.0
    %394 = vmatprep.subr.mxu0 0.0
    %395 = vmatpush1.msra.mxu0 0.0
    %396 = vmatprep.subr.mxu0 0.0
    %397 = vmatpush1.msra.mxu0 0.0
    %398 = vmatprep.subr.mxu0 0.0
    %399 = vmatpush1.msra.mxu0 0.0
    %400 = vmatprep.subr.mxu0 0.0
    %401 = vmatpush1.msra.mxu0 0.0
    %402 = vmatprep.subr.mxu0 0.0
    %403 = vmatpush1.msra.mxu0 0.0
    %404 = vmatprep.subr.mxu0 0.0
    %405 = vmatpush1.msra.mxu0 0.0
    %406 = vmatprep.subr.mxu0 0.0
    %407 = vmatpush1.msra.mxu0 0.0
    %408 = vmatprep.subr.mxu0 0.0
    %409 = vmatpush1.msra.mxu0 0.0
    %410 = vmatprep.subr.mxu0 0.0
    %411 = vmatpush1.msra.mxu0 0.0
    %412 = vmatprep.subr.mxu0 0.0
    %413 = vmatpush1.msra.mxu0 0.0
    %414 = vmatprep.subr.mxu0 0.0
    %415 = vmatpush1.msra.mxu0 0.0
    %416 = vmatprep.subr.mxu0 0.0
    %417 = vmatpush1.msra.mxu0 0.0
    %418 = vmatprep.subr.mxu0 0.0
    %419 = vmatpush1.msra.mxu0 0.0
    %420 = vmatprep.subr.mxu0 0.0
    %421 = vmatpush1.msra.mxu0 0.0
    %422 = vmatprep.subr.mxu0 0.0
    %423 = vmatpush1.msra.mxu0 0.0
    %424 = vmatprep.subr.mxu0 0.0
    %425 = vmatpush1.msra.mxu0 0.0
    %426 = vmatprep.mubr.f32.mxu0 0.0
    %427 = vmatmul.mubr.f32.gmra.mrb[0].mxu0 %v360
    %v428 = vpop.f32.mrb[0].mxu0
    %v429 = vadd.f32 %v357, %v428
    %v430 = vpop.f32.mrb[0].mxu0
    %431 = vdwg.mxu0
    %v432 = vtanh.pop %v429
    %v433 = vld [vmem:[%s8] sm:$0xff]
    %v434 = vld [vmem:[%s9] sm:$0xff]
    %436 = vset.pattern.permute.xlu0 0
    %437 = vperm.xlu0 %436, %v434
    %v438 = vpop.permute.xlu0 %437
    %v441 = vsel %vm112, %v433, 0
    %443 = vmatprep.subr.mxu0 0.0
    %444 = vmatpush1.msra.mxu0 %v432
    %445 = vmatprep.subr.mxu0 0.0
    %446 = vmatpush1.msra.mxu0 0.0
    %447 = vmatprep.subr.mxu0 0.0
    %448 = vmatpush1.msra.mxu0 0.0
    %449 = vmatprep.subr.mxu0 0.0
    %450 = vmatpush1.msra.mxu0 0.0
    %451 = vmatprep.subr.mxu0 0.0
    %452 = vmatpush1.msra.mxu0 0.0
    %453 = vmatprep.subr.mxu0 0.0
    %454 = vmatpush1.msra.mxu0 0.0
    %455 = vmatprep.subr.mxu0 0.0
    %456 = vmatpush1.msra.mxu0 0.0
    %457 = vmatprep.subr.mxu0 0.0
    %458 = vmatpush1.msra.mxu0 0.0
    %459 = vmatprep.subr.mxu0 0.0
    %460 = vmatpush1.msra.mxu0 0.0
    %461 = vmatprep.subr.mxu0 0.0
    %462 = vmatpush1.msra.mxu0 0.0
    %463 = vmatprep.subr.mxu0 0.0
    %464 = vmatpush1.msra.mxu0 0.0
    %465 = vmatprep.subr.mxu0 0.0
    %466 = vmatpush1.msra.mxu0 0.0
    %467 = vmatprep.subr.mxu0 0.0
    %468 = vmatpush1.msra.mxu0 0.0
    %469 = vmatprep.subr.mxu0 0.0
    %470 = vmatpush1.msra.mxu0 0.0
    %471 = vmatprep.subr.mxu0 0.0
    %472 = vmatpush1.msra.mxu0 0.0
    %473 = vmatprep.subr.mxu0 0.0
    %474 = vmatpush1.msra.mxu0 0.0
    %475 = vmatprep.subr.mxu0 0.0
    %476 = vmatpush1.msra.mxu0 0.0
    %477 = vmatprep.subr.mxu0 0.0
    %478 = vmatpush1.msra.mxu0 0.0
    %479 = vmatprep.subr.mxu0 0.0
    %480 = vmatpush1.msra.mxu0 0.0
    %481 = vmatprep.subr.mxu0 0.0
    %482 = vmatpush1.msra.mxu0 0.0
    %483 = vmatprep.subr.mxu0 0.0
    %484 = vmatpush1.msra.mxu0 0.0
    %485 = vmatprep.subr.mxu0 0.0
    %486 = vmatpush1.msra.mxu0 0.0
    %487 = vmatprep.subr.mxu0 0.0
    %488 = vmatpush1.msra.mxu0 0.0
    %489 = vmatprep.subr.mxu0 0.0
    %490 = vmatpush1.msra.mxu0 0.0
    %491 = vmatprep.subr.mxu0 0.0
    %492 = vmatpush1.msra.mxu0 0.0
    %493 = vmatprep.subr.mxu0 0.0
    %494 = vmatpush1.msra.mxu0 0.0
    %495 = vmatprep.subr.mxu0 0.0
    %496 = vmatpush1.msra.mxu0 0.0
    %497 = vmatprep.subr.mxu0 0.0
    %498 = vmatpush1.msra.mxu0 0.0
    %499 = vmatprep.subr.mxu0 0.0
    %500 = vmatpush1.msra.mxu0 0.0
    %501 = vmatprep.subr.mxu0 0.0
    %502 = vmatpush1.msra.mxu0 0.0
    %503 = vmatprep.subr.mxu0 0.0
    %504 = vmatpush1.msra.mxu0 0.0
    %505 = vmatprep.subr.mxu0 0.0
    %506 = vmatpush1.msra.mxu0 0.0
    %507 = vmatprep.mubr.f32.mxu0 0.0
    %508 = vmatmul.mubr.f32.gmra.mrb[0].mxu0 %v441
    %v509 = vpop.f32.mrb[0].mxu0
    %v510 = vadd.f32 %v438, %v509
    %v511 = vpop.f32.mrb[0].mxu0
    %512 = vdwg.mxu0
    %v513 = vtanh.pop %v510
    %p514 = scmp.eq.s32.totalorder 0, 0
    // Predicated region
    $region42: #{tpu_custom_call.1} parent=1 // pred_check
      %p515 = pneg %p514
    $region43: #{tpu_custom_call.1} parent=1 // pred_check_branch
      %517 = sbr.rel (%p515) target = $region45
    $region44: #{tpu_custom_call.1} parent=1 // pred_region
      %518 = vst [vmem:[#allocation3] sm:$0xff] 0.0
    $region45: #{tpu_custom_call.1} parent=1 // pred_fallthru
      _
    %vm519 = vcmp.ne.f32.partialorder %v513, 0.0
    %v520 = vld [vmem:[#allocation3] sm:$0xff]
    %v521 = vsel %vm519, %v513, %v520
    %v522 = vlaneseq
    %v523 = vand.u32 %v522, 127
    %524 = vrot.lane.b32.xlu0 %v521, 2
    %v525 = vpop.permute.xlu0 %524
    %vm526 = vcmp.ge.s32.totalorder %v523, 2
    %v527 = vsel %vm526, %v525, 0.0
    %vm528 = vcmp.ne.f32.partialorder %v521, 0.0
    %v529 = vsel %vm528, %v521, %v527
    %530 = vrot.lane.b32.xlu0 %v529, 4
    %v531 = vpop.permute.xlu0 %530
    %vm532 = vcmp.ge.s32.totalorder %v523, 4
    %v533 = vsel %vm532, %v531, 0.0
    %vm534 = vcmp.ne.f32.partialorder %v529, 0.0
    %v535 = vsel %vm534, %v529, %v533
    %536 = vrot.lane.b32.xlu0 %v535, 8
    %v537 = vpop.permute.xlu0 %536
    %vm538 = vcmp.ge.s32.totalorder %v523, 8
    %v539 = vsel %vm538, %v537, 0.0
    %vm540 = vcmp.ne.f32.partialorder %v535, 0.0
    %v541 = vsel %vm540, %v535, %v539
    %542 = vrot.lane.b32.xlu0 %v541, 16
    %v543 = vpop.permute.xlu0 %542
    %vm544 = vcmp.ge.s32.totalorder %v523, 16
    %v545 = vsel %vm544, %v543, 0.0
    %vm546 = vcmp.ne.f32.partialorder %v541, 0.0
    %v547 = vsel %vm546, %v541, %v545
    %548 = vrot.lane.b32.xlu0 %v547, 32
    %v549 = vpop.permute.xlu0 %548
    %vm550 = vcmp.ge.s32.totalorder %v523, 32
    %v551 = vsel %vm550, %v549, 0.0
    %vm552 = vcmp.ne.f32.partialorder %v547, 0.0
    %v553 = vsel %vm552, %v547, %v551
    %554 = vrot.lane.b32.xlu0 %v553, 64
    %v555 = vpop.permute.xlu0 %554
    %vm556 = vcmp.ge.s32.totalorder %v523, 64
    %v557 = vsel %vm556, %v555, 0.0
    %vm558 = vcmp.ne.f32.partialorder %v553, 0.0
    %v559 = vsel %vm558, %v553, %v557
    %561 = vrot.lane.b32.xlu0 %v559, 2
    %v562 = vpop.permute.xlu0 %561
    %v564 = vsel %vm157, %v562, 0.0
    %565 = vst [vmem:[#allocation3] sm:$0xff] %v564
    %566 = vst [vmem:[#allocation4] sm:$0xff] %v559
    // Predicated region
    $region46: #{tpu_custom_call.1} parent=1 // pred_check
      _
    $region47: #{tpu_custom_call.1} parent=1 // pred_check_branch
      %568 = sbr.rel (0) target = $region49
    $region48: #{tpu_custom_call.1} parent=1 // pred_region
      %s570 = ssub.s32 128, 128
      %571 = vsyncadd [#allocation5], %s570
      %s573 = sshll.u32 [#allocation4], 4
      %s574 = int_to_ptr.vmem [resolvable:$true] %s573
      %576 = dma.vmem_to_hbm [thread:$0]  %s574, 128, %s10, [#allocation5]
    $region49: #{tpu_custom_call.1} parent=1 // pred_fallthru
      _
    // Predicated region
    $region50: #{tpu_custom_call.1} parent=1 // pred_check
      _
    $region51: #{tpu_custom_call.1} parent=1 // pred_check_branch
      %578 = sbr.rel (0) target = $region53
    $region52: #{tpu_custom_call.1} parent=1 // pred_region
      %579 = dma.done [#allocation5], 128
    $region53: #{tpu_custom_call.1} parent=1 // pred_fallthru
      _
    %580 = vsyncpa [#allocation5], 1

</llo_original>
